<compile_context>
chip_gen: v7x
topology: tpu7x:2x2x1
jax: 0.10.0
libtpu: 0.0.40
codegen_flags: <defaults>
</compile_context>

<pallas_src>
import jax
import jax.numpy as jnp
from jax.experimental import pallas as pl
from jax.experimental.pallas import tpu as pltpu

HIDDEN = 64        # fixed by the module: nn.Linear(latent_dim, 64)
HIDDEN_PAD = 128   # hidden padded to one full lane width (zero cols are free on MXU)
LANE = 128         # TPU lane width


def _round_up(x, m):
    return ((x + m - 1) // m) * m


def classifier_kernel(z_ref, w1_ref, b1_ref, w2_ref, b2_ref, out_ref):
    # Linear 1 (MXU matmul, f32 accumulation) + bias; hidden is lane-dense.
    h = jnp.dot(z_ref[...], w1_ref[...], preferred_element_type=jnp.float32)
    h = h + b1_ref[...]                      # (TB, 128) + (1, 128) broadcast
    # LeakyReLU (PyTorch default negative_slope = 0.01) as a single vmax.
    h = jnp.maximum(h, 0.01 * h)
    # Linear 2 (output lanes padded to a multiple of 128 -> dense vst) + bias.
    out = jnp.dot(h, w2_ref[...], preferred_element_type=jnp.float32)
    out_ref[...] = (out + b2_ref[...]).astype(out_ref.dtype)


def prepare_params(w1, b1, w2, b2):
    """One-time weight prep (hoisted out of the per-call path).

    Pads hidden 64 -> 128 and n_classes up to a multiple of 128 so both matmul
    outputs are lane-dense. Weights are (in_features, out_features), i.e.
    PyTorch weight.T. Call once; reuse the returned dict for every forward.
    """
    latent_dim = w1.shape[0]
    n_classes = w2.shape[1]
    n_pad = _round_up(n_classes, LANE)
    w1_p = jnp.zeros((latent_dim, HIDDEN_PAD), jnp.float32).at[:, :HIDDEN].set(
        w1.astype(jnp.float32))
    b1_p = jnp.zeros((1, HIDDEN_PAD), jnp.float32).at[0, :HIDDEN].set(
        b1.astype(jnp.float32))
    w2_p = jnp.zeros((HIDDEN_PAD, n_pad), jnp.float32).at[:HIDDEN, :n_classes].set(
        w2.astype(jnp.float32))
    b2_p = jnp.zeros((1, n_pad), jnp.float32).at[0, :n_classes].set(
        b2.astype(jnp.float32))
    return {"w1": w1_p, "b1": b1_p, "w2": w2_p, "b2": b2_p, "n_classes": n_classes}


def _choose_batch_tile(B, latent_dim, n_pad):
    """Pick the batch tile size.

    Large tiles amortize the ~0.35us per-grid-step overhead; the cap comes from
    a conservative VMEM streaming budget (double-buffered f32 z + padded-logits
    tiles, <= 16 MiB) that leaves ample headroom on v7x's 64 MiB VMEM. We also
    keep >= 2 grid tiles whenever B allows so the "parallel" grid axis can be
    sharded across both v7x TensorCores (neutral on v5e/v6e).
    """
    if B <= 8:
        return B                                      # one full-extent block
    bytes_per_row = 2 * 4 * (latent_dim + n_pad)      # double-buffered f32 in + out
    budget = 16 * 1024 * 1024
    cap = min(4096, max(8, (budget // bytes_per_row) // 8 * 8))
    half = _round_up((B + 1) // 2, 8)                 # >= 2 tiles when possible
    return max(8, min(cap, half))


def classifier_forward_padded(z, params):
    """Returns lane-padded logits (B, n_pad) f32 with no post-kernel slice pass.
    Valid classes are the first params['n_classes'] lanes."""
    B, latent_dim = z.shape
    w1, b1, w2, b2 = params["w1"], params["b1"], params["w2"], params["b2"]
    n_pad = w2.shape[1]

    TB = _choose_batch_tile(B, latent_dim, n_pad)
    num_tiles = pl.cdiv(B, TB)   # ragged last block handled by Pallas: no z copy

    flops = 2 * B * (latent_dim * HIDDEN_PAD + HIDDEN_PAD * n_pad)
    bytes_accessed = 4 * (
        B * (latent_dim + n_pad)                   # stream z in, padded logits out
        + latent_dim * HIDDEN_PAD + HIDDEN_PAD     # w1, b1 (VMEM-resident)
        + HIDDEN_PAD * n_pad + n_pad               # w2, b2 (VMEM-resident)
    )

    return pl.pallas_call(
        classifier_kernel,
        out_shape=jax.ShapeDtypeStruct((B, n_pad), jnp.float32),
        grid_spec=pl.GridSpec(
            grid=(num_tiles,),
            in_specs=[
                # z: streamed over the batch axis (double-buffered)
                pl.BlockSpec((TB, latent_dim), lambda i: (i, 0)),
                # weights / biases: constant block index -> loaded once, VMEM-resident
                pl.BlockSpec((latent_dim, HIDDEN_PAD), lambda i: (0, 0)),
                pl.BlockSpec((1, HIDDEN_PAD), lambda i: (0, 0)),
                pl.BlockSpec((HIDDEN_PAD, n_pad), lambda i: (0, 0)),
                pl.BlockSpec((1, n_pad), lambda i: (0, 0)),
            ],
            out_specs=pl.BlockSpec((TB, n_pad), lambda i: (i, 0)),
        ),
        compiler_params=pltpu.CompilerParams(
            dimension_semantics=("parallel",),        # megacore sharding on v7x
            vmem_limit_bytes=32 * 1024 * 1024,        # headroom for v7x 64 MiB VMEM
        ),
        cost_estimate=pl.CostEstimate(
            flops=flops, transcendentals=0, bytes_accessed=bytes_accessed),
    )(z.astype(jnp.float32), w1, b1, w2, b2)


def classifier_forward(z, params):
    """Convenience wrapper returning exactly (B, n_classes).

    The lane slice re-materializes the (small) logits; bandwidth-sensitive
    callers should consume classifier_forward_padded() directly and fuse."""
    return classifier_forward_padded(z, params)[:, :params["n_classes"]]


def init_params(key, latent_dim, n_classes, hidden=HIDDEN):
    """Deterministic init mimicking nn.Linear's uniform(-1/sqrt(fan_in), 1/sqrt(fan_in))."""
    k1, k2, k3, k4 = jax.random.split(key, 4)
    bound1 = 1.0 / jnp.sqrt(latent_dim)
    bound2 = 1.0 / jnp.sqrt(hidden)
    # Stored as (in_features, out_features) == PyTorch weight.T
    w1 = jax.random.uniform(k1, (latent_dim, hidden), jnp.float32, -bound1, bound1)
    b1 = jax.random.uniform(k2, (hidden,), jnp.float32, -bound1, bound1)
    w2 = jax.random.uniform(k3, (hidden, n_classes), jnp.float32, -bound2, bound2)
    b2 = jax.random.uniform(k4, (n_classes,), jnp.float32, -bound2, bound2)
    return w1, b1, w2, b2


def reference_forward(z, w1, b1, w2, b2):
    h = z @ w1 + b1
    h = jnp.where(h >= 0, h, 0.01 * h)
    return h @ w2 + b2


if __name__ == "__main__":
    key = jax.random.PRNGKey(0)
    kz, kz2, kp = jax.random.split(key, 3)

    latent_dim, n_classes = 32, 10
    w1, b1, w2, b2 = init_params(kp, latent_dim, n_classes)
    params = prepare_params(w1, b1, w2, b2)        # one-time weight prep

    # Case 1: small, tile-aligned batch.
    z = jax.random.normal(kz, (8, latent_dim), jnp.float32)
    out = jax.block_until_ready(classifier_forward(z, params))
    ref = reference_forward(z, w1, b1, w2, b2)
    assert out.shape == (8, n_classes)
    assert jnp.allclose(out, ref, atol=1e-5, rtol=1e-5), "mismatch vs reference (aligned)"

    # Case 2: ragged batch (last grid block extends past B; no host-side padding copy).
    z2 = jax.random.normal(kz2, (20, latent_dim), jnp.float32)
    out2 = jax.block_until_ready(classifier_forward(z2, params))
    ref2 = reference_forward(z2, w1, b1, w2, b2)
    assert out2.shape == (20, n_classes)
    assert jnp.allclose(out2, ref2, atol=1e-5, rtol=1e-5), "mismatch vs reference (ragged)"

    print("KERNEL_OK")
</pallas_src>

<mosaic_0001>
module attributes {stable_mosaic.version = 11 : i64} {
  func.func @classifier_kernel(%arg0: i32, %arg1: memref<8x32xf32, #tpu.memory_space<vmem>>, %arg2: memref<32x128xf32, #tpu.memory_space<vmem>>, %arg3: memref<1x128xf32, #tpu.memory_space<vmem>>, %arg4: memref<128x128xf32, #tpu.memory_space<vmem>>, %arg5: memref<1x128xf32, #tpu.memory_space<vmem>>, %arg6: memref<8x128xf32, #tpu.memory_space<vmem>>) attributes {dimension_semantics = [#tpu.dimension_semantics<parallel>], iteration_bounds = array<i64: 1>, scalar_prefetch = 0 : i64, scratch_operands = 0 : i64, tpu.core_type = #tpu.core_type<tc>, window_params = [{transform_indices = @transform_0, window_bounds = array<i64: 8, 32>}, {pipeline_mode = #tpu.pipeline_mode<synchronous>, transform_indices = @transform_1, window_bounds = array<i64: 32, 128>}, {pipeline_mode = #tpu.pipeline_mode<synchronous>, transform_indices = @transform_2, window_bounds = array<i64: 1, 128>}, {pipeline_mode = #tpu.pipeline_mode<synchronous>, transform_indices = @transform_3, window_bounds = array<i64: 128, 128>}, {pipeline_mode = #tpu.pipeline_mode<synchronous>, transform_indices = @transform_4, window_bounds = array<i64: 1, 128>}, {transform_indices = @transform_5, window_bounds = array<i64: 8, 128>}]} {
    %c0 = arith.constant 0 : index
    %c0_0 = arith.constant 0 : index
    %0 = vector.load %arg1[%c0, %c0_0] : memref<8x32xf32, #tpu.memory_space<vmem>>, vector<8x32xf32>
    %c0_1 = arith.constant 0 : index
    %c0_2 = arith.constant 0 : index
    %1 = vector.load %arg2[%c0_1, %c0_2] : memref<32x128xf32, #tpu.memory_space<vmem>>, vector<32x128xf32>
    %cst = arith.constant dense<0.000000e+00> : vector<8x128xf32>
    %2 = tpu.matmul %0, %1, %cst {dimension_numbers = #tpu.dot_dimension_numbers<[1], [0], [0], [1], [0, 0, 1, 1], [], []>} : vector<8x32xf32>, vector<32x128xf32>, vector<8x128xf32> -> vector<8x128xf32>
    %c0_3 = arith.constant 0 : index
    %c0_4 = arith.constant 0 : index
    %3 = vector.load %arg3[%c0_3, %c0_4] : memref<1x128xf32, #tpu.memory_space<vmem>>, vector<1x128xf32>
    %4 = vector.broadcast %3 : vector<1x128xf32> to vector<8x128xf32>
    %5 = arith.addf %2, %4 : vector<8x128xf32>
    %cst_5 = arith.constant 0.00999999977 : f32
    %6 = vector.broadcast %cst_5 : f32 to vector<8x128xf32>
    %7 = arith.mulf %6, %5 : vector<8x128xf32>
    %8 = arith.maximumf %5, %7 : vector<8x128xf32>
    %c0_6 = arith.constant 0 : index
    %c0_7 = arith.constant 0 : index
    %9 = vector.load %arg4[%c0_6, %c0_7] : memref<128x128xf32, #tpu.memory_space<vmem>>, vector<128x128xf32>
    %cst_8 = arith.constant dense<0.000000e+00> : vector<8x128xf32>
    %10 = tpu.matmul %8, %9, %cst_8 {dimension_numbers = #tpu.dot_dimension_numbers<[1], [0], [0], [1], [0, 0, 1, 1], [], []>} : vector<8x128xf32>, vector<128x128xf32>, vector<8x128xf32> -> vector<8x128xf32>
    %c0_9 = arith.constant 0 : index
    %c0_10 = arith.constant 0 : index
    %11 = vector.load %arg5[%c0_9, %c0_10] : memref<1x128xf32, #tpu.memory_space<vmem>>, vector<1x128xf32>
    %12 = vector.broadcast %11 : vector<1x128xf32> to vector<8x128xf32>
    %13 = arith.addf %10, %12 : vector<8x128xf32>
    %c0_11 = arith.constant 0 : index
    %c0_12 = arith.constant 0 : index
    %14 = vector.load %arg6[%c0_11, %c0_12] : memref<8x128xf32, #tpu.memory_space<vmem>>, vector<8x128xf32>
    tpu.vector_store %arg6[%c0_11, %c0_12], %13 {strides = array<i32>} : memref<8x128xf32, #tpu.memory_space<vmem>>, vector<8x128xf32>,
    return
  }
  func.func @transform_0(%arg0: i32) -> (i32, i32) {
    %c0_i32 = arith.constant 0 : i32
    %c0_i32_0 = arith.constant 0 : i32
    return %arg0, %c0_i32 : i32, i32
  }
  func.func @transform_1(%arg0: i32) -> (i32, i32) {
    %c0_i32 = arith.constant 0 : i32
    %c0_i32_0 = arith.constant 0 : i32
    %c0_i32_1 = arith.constant 0 : i32
    return %c0_i32, %c0_i32_0 : i32, i32
  }
  func.func @transform_2(%arg0: i32) -> (i32, i32) {
    %c0_i32 = arith.constant 0 : i32
    %c0_i32_0 = arith.constant 0 : i32
    %c0_i32_1 = arith.constant 0 : i32
    return %c0_i32, %c0_i32_0 : i32, i32
  }
  func.func @transform_3(%arg0: i32) -> (i32, i32) {
    %c0_i32 = arith.constant 0 : i32
    %c0_i32_0 = arith.constant 0 : i32
    %c0_i32_1 = arith.constant 0 : i32
    return %c0_i32, %c0_i32_0 : i32, i32
  }
  func.func @transform_4(%arg0: i32) -> (i32, i32) {
    %c0_i32 = arith.constant 0 : i32
    %c0_i32_0 = arith.constant 0 : i32
    %c0_i32_1 = arith.constant 0 : i32
    return %c0_i32, %c0_i32_0 : i32, i32
  }
  func.func @transform_5(%arg0: i32) -> (i32, i32) {
    %c0_i32 = arith.constant 0 : i32
    %c0_i32_0 = arith.constant 0 : i32
    return %arg0, %c0_i32 : i32, i32
  }
}

</mosaic_0001>

<llo_original>
// kernel: tpu_custom_call.1
$region0: #{tpu_custom_call.1}
  #allocation0 [shape = 'u32[]', space=smem, size = 0x4, offset = 0x4, fixed_abs, tag = 'smem constant byte address 0x4 - core index']
  #allocation1 [shape = 'u32[144,128]{1,0:T(1,128)}', space=vmem, size = 0x12000, scoped, tag = 'internal scratch']
  %s0 = inlined_call_operand.hbm [shape: f32[8,32], index: 0, kind: input, shape index: {}]
  %s1 = inlined_call_operand.hbm [shape: f32[32,128], index: 1, kind: input, shape index: {}]
  %s2 = inlined_call_operand.vmem [shape: f32[1,128], index: 2, kind: input, shape index: {}]
  %s3 = inlined_call_operand.hbm [shape: f32[128,128], index: 3, kind: input, shape index: {}]
  %s4 = inlined_call_operand.vmem [shape: f32[1,128], index: 4, kind: input, shape index: {}]
  %s5 = inlined_call_operand.hbm [shape: f32[8,128], index: 5, kind: output, shape index: {}]
  %s6 = sld [smem:[#allocation0]]
  $region42: #{tpu_custom_call.1} parent=0
    _
  %s8 = ssub.s32 1, %s6
  %s9 = scalar_select 0, %s8, %s6
  $region1: #{tpu_custom_call.1} parent=0
    #allocation2 [shape = 'u8[4096]{0}', space=vmem, size = 0x1000, scoped, tag = 'input window, operand 0, single buffered']
    #allocation3 [shape = 's32[1]{0}', space=sflag, size = 0x4, scoped, tag = 'scoped memory for tpu_custom_call.1']
    #allocation4 [shape = 's32[1]{0}', space=sflag, size = 0x4, scoped, tag = 'scoped memory for tpu_custom_call.1']
    #allocation5 [shape = 'u8[16384]{0}', space=vmem, size = 0x4000, scoped, tag = 'input window, operand 1, single buffered']
    #allocation6 [shape = 's32[1]{0}', space=sflag, size = 0x4, scoped, tag = 'scoped memory for tpu_custom_call.1']
    #allocation7 [shape = 'u8[65536]{0}', space=vmem, size = 0x10000, scoped, tag = 'input window, operand 3, single buffered']
    #allocation8 [shape = 'u8[4096]{0}', space=vmem, size = 0x1000, scoped, tag = 'output window, operand 0, single buffered']
    %10 = vsyncpa [#allocation3], 0
    %11 = vsyncpa [#allocation6], 0
    %12 = vsyncpa [#allocation4], 0
    // Predicated region
    $region2: #{tpu_custom_call.1} parent=1 // pred_check
      _
    $region3: #{tpu_custom_call.1} parent=1 // pred_check_branch
      %14 = sbr.rel (0) target = $region5
    $region4: #{tpu_custom_call.1} parent=1 // pred_region
      %s16 = ssub.s32 128, 128
      %17 = vsyncadd [#allocation3], %s16
      %s19 = sshll.u32 [#allocation2], 4
      %s20 = int_to_ptr.vmem [resolvable:$true] %s19
      %22 = dma.hbm_to_vmem [thread:$0]  %s0, 128, %s20, [#allocation3]
    $region5: #{tpu_custom_call.1} parent=1 // pred_fallthru
      _
    // Predicated region
    $region6: #{tpu_custom_call.1} parent=1 // pred_check
      _
    $region7: #{tpu_custom_call.1} parent=1 // pred_check_branch
      %24 = sbr.rel (0) target = $region9
    $region8: #{tpu_custom_call.1} parent=1 // pred_region
      %s26 = ssub.s32 512, 512
      %27 = vsyncadd [#allocation6], %s26
      %s28 = sshll.u32 [#allocation5], 4
      %s29 = int_to_ptr.vmem [resolvable:$true] %s28
      %34 = dma.hbm_to_vmem [thread:$0]  %s1, 512, %s29, [#allocation6], 128, 128, 8
    $region9: #{tpu_custom_call.1} parent=1 // pred_fallthru
      _
    // Predicated region
    $region10: #{tpu_custom_call.1} parent=1 // pred_check
      _
    $region11: #{tpu_custom_call.1} parent=1 // pred_check_branch
      %36 = sbr.rel (0) target = $region13
    $region12: #{tpu_custom_call.1} parent=1 // pred_region
      _
    $region13: #{tpu_custom_call.1} parent=1 // pred_fallthru
      _
    // Predicated region
    $region14: #{tpu_custom_call.1} parent=1 // pred_check
      _
    $region15: #{tpu_custom_call.1} parent=1 // pred_check_branch
      %38 = sbr.rel (0) target = $region17
    $region16: #{tpu_custom_call.1} parent=1 // pred_region
      %s40 = ssub.s32 2048, 2048
      %41 = vsyncadd [#allocation6], %s40
      %s42 = sshll.u32 [#allocation7], 4
      %s43 = int_to_ptr.vmem [resolvable:$true] %s42
      %48 = dma.hbm_to_vmem [thread:$0]  %s3, 2048, %s43, [#allocation6], 128, 128, 8
    $region17: #{tpu_custom_call.1} parent=1 // pred_fallthru
      _
    // Predicated region
    $region18: #{tpu_custom_call.1} parent=1 // pred_check
      _
    $region19: #{tpu_custom_call.1} parent=1 // pred_check_branch
      %50 = sbr.rel (0) target = $region21
    $region20: #{tpu_custom_call.1} parent=1 // pred_region
      _
    $region21: #{tpu_custom_call.1} parent=1 // pred_fallthru
      _
    // Predicated region
    $region22: #{tpu_custom_call.1} parent=1 // pred_check
      _
    $region23: #{tpu_custom_call.1} parent=1 // pred_check_branch
      %52 = sbr.rel (0) target = $region25
    $region24: #{tpu_custom_call.1} parent=1 // pred_region
      %53 = dma.done [#allocation3], 128
    $region25: #{tpu_custom_call.1} parent=1 // pred_fallthru
      _
    // Predicated region
    $region26: #{tpu_custom_call.1} parent=1 // pred_check
      _
    $region27: #{tpu_custom_call.1} parent=1 // pred_check_branch
      %55 = sbr.rel (0) target = $region29
    $region28: #{tpu_custom_call.1} parent=1 // pred_region
      %56 = dma.done [#allocation6], 512
    $region29: #{tpu_custom_call.1} parent=1 // pred_fallthru
      _
    // Predicated region
    $region30: #{tpu_custom_call.1} parent=1 // pred_check
      _
    $region31: #{tpu_custom_call.1} parent=1 // pred_check_branch
      %58 = sbr.rel (0) target = $region33
    $region32: #{tpu_custom_call.1} parent=1 // pred_region
      %59 = dma.done [#allocation6], 2048
    $region33: #{tpu_custom_call.1} parent=1 // pred_fallthru
      _
    %v60 = vld [vmem:[#allocation2] sm:$0xff]
    %v61 = vld [vmem:[#allocation5] sm:$0xff]
    %v62 = vld [vmem:[#allocation5 + $0x8] sm:$0xff]
    %v63 = vld [vmem:[#allocation5 + $0x10] sm:$0xff]
    %v64 = vld [vmem:[#allocation5 + $0x18] sm:$0xff]
    %v65 = vld [vmem:[%s2] sm:$0x1]
    %v67 = vlaneseq
    %v68 = vshrl.u32 %v67, 7
    %v69 = vsub.s32 0, %v68
    %v70 = vrot.slane %v65, %v69
    %vm72 = vcmask 261120
    %v74 = vsel %vm72, %v60, 0
    %76 = vmatprep.subr.mxu0 0.0
    %77 = vmatpush1.msra.mxu0 %v61
    %78 = vmatprep.subr.mxu0 0.0
    %79 = vmatpush1.msra.mxu0 %v62
    %80 = vmatprep.subr.mxu0 0.0
    %81 = vmatpush1.msra.mxu0 %v63
    %82 = vmatprep.subr.mxu0 0.0
    %83 = vmatpush1.msra.mxu0 %v64
    %84 = vmatprep.subr.mxu0 0.0
    %85 = vmatpush1.msra.mxu0 0.0
    %86 = vmatprep.subr.mxu0 0.0
    %87 = vmatpush1.msra.mxu0 0.0
    %88 = vmatprep.subr.mxu0 0.0
    %89 = vmatpush1.msra.mxu0 0.0
    %90 = vmatprep.subr.mxu0 0.0
    %91 = vmatpush1.msra.mxu0 0.0
    %92 = vmatprep.subr.mxu0 0.0
    %93 = vmatpush1.msra.mxu0 0.0
    %94 = vmatprep.subr.mxu0 0.0
    %95 = vmatpush1.msra.mxu0 0.0
    %96 = vmatprep.subr.mxu0 0.0
    %97 = vmatpush1.msra.mxu0 0.0
    %98 = vmatprep.subr.mxu0 0.0
    %99 = vmatpush1.msra.mxu0 0.0
    %100 = vmatprep.subr.mxu0 0.0
    %101 = vmatpush1.msra.mxu0 0.0
    %102 = vmatprep.subr.mxu0 0.0
    %103 = vmatpush1.msra.mxu0 0.0
    %104 = vmatprep.subr.mxu0 0.0
    %105 = vmatpush1.msra.mxu0 0.0
    %106 = vmatprep.subr.mxu0 0.0
    %107 = vmatpush1.msra.mxu0 0.0
    %108 = vmatprep.subr.mxu0 0.0
    %109 = vmatpush1.msra.mxu0 0.0
    %110 = vmatprep.subr.mxu0 0.0
    %111 = vmatpush1.msra.mxu0 0.0
    %112 = vmatprep.subr.mxu0 0.0
    %113 = vmatpush1.msra.mxu0 0.0
    %114 = vmatprep.subr.mxu0 0.0
    %115 = vmatpush1.msra.mxu0 0.0
    %116 = vmatprep.subr.mxu0 0.0
    %117 = vmatpush1.msra.mxu0 0.0
    %118 = vmatprep.subr.mxu0 0.0
    %119 = vmatpush1.msra.mxu0 0.0
    %120 = vmatprep.subr.mxu0 0.0
    %121 = vmatpush1.msra.mxu0 0.0
    %122 = vmatprep.subr.mxu0 0.0
    %123 = vmatpush1.msra.mxu0 0.0
    %124 = vmatprep.subr.mxu0 0.0
    %125 = vmatpush1.msra.mxu0 0.0
    %126 = vmatprep.subr.mxu0 0.0
    %127 = vmatpush1.msra.mxu0 0.0
    %128 = vmatprep.subr.mxu0 0.0
    %129 = vmatpush1.msra.mxu0 0.0
    %130 = vmatprep.subr.mxu0 0.0
    %131 = vmatpush1.msra.mxu0 0.0
    %132 = vmatprep.subr.mxu0 0.0
    %133 = vmatpush1.msra.mxu0 0.0
    %134 = vmatprep.subr.mxu0 0.0
    %135 = vmatpush1.msra.mxu0 0.0
    %136 = vmatprep.subr.mxu0 0.0
    %137 = vmatpush1.msra.mxu0 0.0
    %138 = vmatprep.subr.mxu0 0.0
    %139 = vmatpush1.msra.mxu0 0.0
    %140 = vmatprep.mubr.f32.mxu0 0.0
    %141 = vmatmul.mubr.f32.gmra.mrb[0].mxu0 %v74
    %v142 = vpop.f32.mrb[0].mxu0
    %v143 = vadd.f32 %v70, %v142
    %v144 = vpop.f32.mrb[0].mxu0
    %145 = vdwg.mxu0
    %v146 = vmul.f32 %v143, 0.01
    %v147 = vmax.f32 %v143, %v146
    %v148 = vld [vmem:[#allocation7] sm:$0xff]
    %v149 = vld [vmem:[#allocation7 + $0x8] sm:$0xff]
    %v150 = vld [vmem:[#allocation7 + $0x10] sm:$0xff]
    %v151 = vld [vmem:[#allocation7 + $0x18] sm:$0xff]
    %v152 = vld [vmem:[#allocation7 + $0x20] sm:$0xff]
    %v153 = vld [vmem:[#allocation7 + $0x28] sm:$0xff]
    %v154 = vld [vmem:[#allocation7 + $0x30] sm:$0xff]
    %v155 = vld [vmem:[#allocation7 + $0x38] sm:$0xff]
    %v156 = vld [vmem:[#allocation7 + $0x40] sm:$0xff]
    %v157 = vld [vmem:[#allocation7 + $0x48] sm:$0xff]
    %v158 = vld [vmem:[#allocation7 + $0x50] sm:$0xff]
    %v159 = vld [vmem:[#allocation7 + $0x58] sm:$0xff]
    %v160 = vld [vmem:[#allocation7 + $0x60] sm:$0xff]
    %v161 = vld [vmem:[#allocation7 + $0x68] sm:$0xff]
    %v162 = vld [vmem:[#allocation7 + $0x70] sm:$0xff]
    %v163 = vld [vmem:[#allocation7 + $0x78] sm:$0xff]
    %v164 = vld [vmem:[%s4] sm:$0x1]
    %v166 = vlaneseq
    %v167 = vshrl.u32 %v166, 7
    %v168 = vsub.s32 0, %v167
    %v169 = vrot.slane %v164, %v168
    %171 = vmatprep.subr.mxu0 0.0
    %172 = vmatpush1.msra.mxu0 %v148
    %173 = vmatprep.subr.mxu0 0.0
    %174 = vmatpush1.msra.mxu0 %v149
    %175 = vmatprep.subr.mxu0 0.0
    %176 = vmatpush1.msra.mxu0 %v150
    %177 = vmatprep.subr.mxu0 0.0
    %178 = vmatpush1.msra.mxu0 %v151
    %179 = vmatprep.subr.mxu0 0.0
    %180 = vmatpush1.msra.mxu0 %v152
    %181 = vmatprep.subr.mxu0 0.0
    %182 = vmatpush1.msra.mxu0 %v153
    %183 = vmatprep.subr.mxu0 0.0
    %184 = vmatpush1.msra.mxu0 %v154
    %185 = vmatprep.subr.mxu0 0.0
    %186 = vmatpush1.msra.mxu0 %v155
    %187 = vmatprep.subr.mxu0 0.0
    %188 = vmatpush1.msra.mxu0 %v156
    %189 = vmatprep.subr.mxu0 0.0
    %190 = vmatpush1.msra.mxu0 %v157
    %191 = vmatprep.subr.mxu0 0.0
    %192 = vmatpush1.msra.mxu0 %v158
    %193 = vmatprep.subr.mxu0 0.0
    %194 = vmatpush1.msra.mxu0 %v159
    %195 = vmatprep.subr.mxu0 0.0
    %196 = vmatpush1.msra.mxu0 %v160
    %197 = vmatprep.subr.mxu0 0.0
    %198 = vmatpush1.msra.mxu0 %v161
    %199 = vmatprep.subr.mxu0 0.0
    %200 = vmatpush1.msra.mxu0 %v162
    %201 = vmatprep.subr.mxu0 0.0
    %202 = vmatpush1.msra.mxu0 %v163
    %203 = vmatprep.subr.mxu0 0.0
    %204 = vmatpush1.msra.mxu0 0.0
    %205 = vmatprep.subr.mxu0 0.0
    %206 = vmatpush1.msra.mxu0 0.0
    %207 = vmatprep.subr.mxu0 0.0
    %208 = vmatpush1.msra.mxu0 0.0
    %209 = vmatprep.subr.mxu0 0.0
    %210 = vmatpush1.msra.mxu0 0.0
    %211 = vmatprep.subr.mxu0 0.0
    %212 = vmatpush1.msra.mxu0 0.0
    %213 = vmatprep.subr.mxu0 0.0
    %214 = vmatpush1.msra.mxu0 0.0
    %215 = vmatprep.subr.mxu0 0.0
    %216 = vmatpush1.msra.mxu0 0.0
    %217 = vmatprep.subr.mxu0 0.0
    %218 = vmatpush1.msra.mxu0 0.0
    %219 = vmatprep.subr.mxu0 0.0
    %220 = vmatpush1.msra.mxu0 0.0
    %221 = vmatprep.subr.mxu0 0.0
    %222 = vmatpush1.msra.mxu0 0.0
    %223 = vmatprep.subr.mxu0 0.0
    %224 = vmatpush1.msra.mxu0 0.0
    %225 = vmatprep.subr.mxu0 0.0
    %226 = vmatpush1.msra.mxu0 0.0
    %227 = vmatprep.subr.mxu0 0.0
    %228 = vmatpush1.msra.mxu0 0.0
    %229 = vmatprep.subr.mxu0 0.0
    %230 = vmatpush1.msra.mxu0 0.0
    %231 = vmatprep.subr.mxu0 0.0
    %232 = vmatpush1.msra.mxu0 0.0
    %233 = vmatprep.subr.mxu0 0.0
    %234 = vmatpush1.msra.mxu0 0.0
    %235 = vmatprep.mubr.f32.mxu0 0.0
    %236 = vmatmul.mubr.f32.gmra.mrb[0].mxu0 %v147
    %v237 = vpop.f32.mrb[0].mxu0
    %v238 = vadd.f32 %v169, %v237
    %v239 = vpop.f32.mrb[0].mxu0
    %240 = vdwg.mxu0
    %241 = vst [vmem:[#allocation8] sm:$0xff] %v238
    // Predicated region
    $region34: #{tpu_custom_call.1} parent=1 // pred_check
      _
    $region35: #{tpu_custom_call.1} parent=1 // pred_check_branch
      %243 = sbr.rel (0) target = $region37
    $region36: #{tpu_custom_call.1} parent=1 // pred_region
      %s245 = ssub.s32 128, 128
      %246 = vsyncadd [#allocation4], %s245
      %s248 = sshll.u32 [#allocation8], 4
      %s249 = int_to_ptr.vmem [resolvable:$true] %s248
      %251 = dma.vmem_to_hbm [thread:$0]  %s249, 128, %s5, [#allocation4]
    $region37: #{tpu_custom_call.1} parent=1 // pred_fallthru
      _
    // Predicated region
    $region38: #{tpu_custom_call.1} parent=1 // pred_check
      _
    $region39: #{tpu_custom_call.1} parent=1 // pred_check_branch
      %253 = sbr.rel (0) target = $region41
    $region40: #{tpu_custom_call.1} parent=1 // pred_region
      %254 = dma.done [#allocation4], 128
    $region41: #{tpu_custom_call.1} parent=1 // pred_fallthru
      _
    %255 = vsyncpa [#allocation3], 1
    %256 = vsyncpa [#allocation6], 1
    %257 = vsyncpa [#allocation4], 1

</llo_original>
